<compile_context>
chip_gen: v6e
topology: v6e:2x2x1
jax: 0.10.0
libtpu: 0.0.40
codegen_flags: <defaults>
</compile_context>

<pallas_src>
import math

import jax
import jax.numpy as jnp
from jax.experimental import pallas as pl
from jax.experimental.pallas import tpu as pltpu


_MiB = 1024 * 1024


def _chip_budget():
    """Return (target_tile_bytes, vmem_limit_bytes), generation-aware but conservative.

    Default (v5e/v6e, 128 MiB physical VMEM): 4 MiB tiles, 48 MiB scoped request.
    v7x (64 MiB physical VMEM, 3.2 TB/s HBM): 6 MiB tiles so the ~0.35 us per-step
    cost is amortized; 3 arrays x 2 buffers x 6 MiB = 36 MiB < 48 MiB request < 64 MiB.
    """
    target, limit = 4 * _MiB, 48 * _MiB
    try:
        info = pltpu.get_tpu_info()
        vmem_cap = getattr(info, "vmem_capacity_bytes", None)
        if vmem_cap is not None and vmem_cap <= 64 * _MiB:
            target = 6 * _MiB
    except Exception:
        pass  # no chip / unknown API surface -> keep safe defaults
    return target, limit


def _sublane_gran(itemsize: int) -> int:
    """Packed-sublane granularity: 8 for f32, 16 for bf16, 32 for int8/fp8."""
    return 8 * max(1, 4 // itemsize)


def _build_pe_table(d_model: int, max_len: int = 5000,
                    dtype=jnp.float32) -> jnp.ndarray:
    """Deterministic sinusoidal positional-encoding table, shape (max_len, d_model).

    Cast to the activation dtype once here so the forward pass never re-casts.
    """
    position = jnp.arange(max_len, dtype=jnp.float32)[:, None]                # (L, 1)
    div_term = jnp.exp(
        jnp.arange(0, d_model, 2, dtype=jnp.float32) * (-math.log(10000.0) / d_model)
    )                                                                          # (ceil(D/2),)
    angles = position * div_term                                               # (L, ceil(D/2))
    pe = jnp.zeros((max_len, d_model), dtype=jnp.float32)
    pe = pe.at[:, 0::2].set(jnp.sin(angles))
    # Guard odd d_model: cos has ceil(D/2) cols but pe[:, 1::2] has floor(D/2).
    pe = pe.at[:, 1::2].set(jnp.cos(angles)[:, : d_model // 2])
    return pe.astype(dtype)


def _add_kernel(x_ref, pe_ref, o_ref):
    # Plain (broadcasted) elementwise add; explicit cast to the output dtype.
    o_ref[...] = (x_ref[...] + pe_ref[...]).astype(o_ref.dtype)


def _compiler_params(vmem_limit_bytes: int):
    return pltpu.CompilerParams(
        dimension_semantics=("parallel", "parallel"),
        vmem_limit_bytes=vmem_limit_bytes,
    )


def _cost_estimate(B, S, D, itemsize):
    return pl.CostEstimate(
        flops=B * S * D,
        transcendentals=0,
        bytes_accessed=2 * B * S * D * itemsize + S * D * itemsize,
    )


def _pe_add_tiled_3d(x, pe_table, donate_x, target_bytes, vmem_limit):
    """D is a multiple of 128: tile the sequence axis, keep D lane-dense."""
    B, S, D = x.shape
    itemsize = jnp.dtype(x.dtype).itemsize
    gran = _sublane_gran(itemsize)

    rows = target_bytes // (D * itemsize)
    rows = max(gran, (rows // gran) * gran)            # dtype-aware sublane rounding
    ts = S if rows >= S else rows                      # full extent also legal

    # Ensure >= 2 grid points so both v7x TensorCores get work (only when the
    # single tile is big enough that splitting it is not pure overhead).
    if pl.cdiv(S, ts) * B == 1 and ts >= 2 * gran and ts * D * itemsize >= _MiB:
        ts = max(gran, ((ts // 2) // gran) * gran)

    # pe source: use the full table (no per-call slice/cast) whenever the block's
    # row count is a multiple of 8 (legal against the (max_len, D) table); the
    # batch-invariant index_map restricts reads to the first ~S rows anyway.
    if pe_table.dtype != x.dtype:
        pe_table = pe_table.astype(x.dtype)            # fallback; pre-cast at init instead
    if ts % 8 == 0:
        pe_in = pe_table
    else:
        pe_in = pe_table[:S]                           # ts == S: full-extent block

    grid = (pl.cdiv(S, ts), B)                         # batch innermost -> pe tile stays resident

    # TODO(synk): pe could use pipeline_mode=pl.Buffered(1) (its block index only
    # changes once per B inner steps) to free one tile of VMEM on v7x.
    return pl.pallas_call(
        _add_kernel,
        out_shape=jax.ShapeDtypeStruct((B, S, D), x.dtype),
        grid_spec=pltpu.PrefetchScalarGridSpec(
            num_scalar_prefetch=0,
            grid=grid,
            in_specs=[
                pl.BlockSpec((pl.Squeezed(), ts, D), lambda s, b: (b, s, 0)),  # x tile (2-D in kernel)
                pl.BlockSpec((ts, D), lambda s, b: (s, 0)),                    # pe tile, batch-invariant
            ],
            out_specs=pl.BlockSpec((pl.Squeezed(), ts, D), lambda s, b: (b, s, 0)),
        ),
        compiler_params=_compiler_params(vmem_limit),
        cost_estimate=_cost_estimate(B, S, D, itemsize),
        input_output_aliases={0: 0} if donate_x else {},
    )(x, pe_in)


def _pe_add_flat_2d(x, pe_table, donate_x, target_bytes, vmem_limit):
    """Small / non-128-multiple D: flatten to (B, S*D) for a lane-dense layout."""
    B, S, D = x.shape
    W = S * D
    itemsize = jnp.dtype(x.dtype).itemsize
    gran = _sublane_gran(itemsize)

    pe_slice = pe_table[:S]
    if pe_slice.dtype != x.dtype:
        pe_slice = pe_slice.astype(x.dtype)
    x2 = x.reshape(B, W)
    pe2 = pe_slice.reshape(1, W)

    # Lane tile: full extent when it fits the budget (or is below a vreg row),
    # otherwise a 128-multiple.
    if W * itemsize <= target_bytes or W <= 128:
        tw = W
    else:
        tw = max(128, ((target_bytes // itemsize) // 128) * 128)
        tw = min(tw, W)

    # Batch tile: sized to the byte budget (no fixed 8-row cap), multiple of the
    # packed-sublane granularity, or full extent.
    tb_budget = max(1, target_bytes // max(1, tw * itemsize))
    if tb_budget >= B:
        tb = B
    else:
        tb = max(gran, (tb_budget // gran) * gran)
        if tb >= B:
            tb = B

    # Ensure >= 2 grid points for v7x's two TensorCores when the single tile is large.
    if pl.cdiv(W, tw) * pl.cdiv(B, tb) == 1 and tb * tw * itemsize >= _MiB:
        if W >= 256:
            tw = max(128, ((tw // 2) // 128) * 128)
        elif B >= 2 * gran:
            tb = max(gran, ((tb // 2) // gran) * gran)

    grid = (pl.cdiv(W, tw), pl.cdiv(B, tb))            # batch innermost -> pe tile stays resident

    out2 = pl.pallas_call(
        _add_kernel,
        out_shape=jax.ShapeDtypeStruct((B, W), x.dtype),
        grid_spec=pltpu.PrefetchScalarGridSpec(
            num_scalar_prefetch=0,
            grid=grid,
            in_specs=[
                pl.BlockSpec((tb, tw), lambda w, b: (b, w)),   # x tile
                pl.BlockSpec((1, tw), lambda w, b: (0, w)),    # pe tile, batch-invariant
            ],
            out_specs=pl.BlockSpec((tb, tw), lambda w, b: (b, w)),
        ),
        compiler_params=_compiler_params(vmem_limit),
        cost_estimate=_cost_estimate(B, S, D, itemsize),
        input_output_aliases={0: 0} if donate_x else {},
    )(x2, pe2)
    return out2.reshape(B, S, D)


def positional_encoding_forward(x: jnp.ndarray, pe_table: jnp.ndarray,
                                donate_x: bool = False) -> jnp.ndarray:
    """x: (B, S, D).  pe_table: (max_len, D).  Returns x + pe[None, :S, :]."""
    B, S, D = x.shape
    if S > pe_table.shape[0]:
        raise ValueError(f"sequence length {S} exceeds max_len {pe_table.shape[0]}")
    target_bytes, vmem_limit = _chip_budget()
    if D % 128 == 0:
        return _pe_add_tiled_3d(x, pe_table, donate_x, target_bytes, vmem_limit)
    return _pe_add_flat_2d(x, pe_table, donate_x, target_bytes, vmem_limit)


if __name__ == "__main__":
    # Demo shape matching the module's convention (B, S, D) with small d_model:
    # exercises the lane-dense flattened path.
    B, S, D = 2, 8, 32
    MAX_LEN = 64

    key = jax.random.PRNGKey(0)
    x = jax.random.normal(key, (B, S, D), dtype=jnp.float32)
    pe_table = _build_pe_table(D, max_len=MAX_LEN, dtype=x.dtype)

    out = jax.block_until_ready(positional_encoding_forward(x, pe_table))
    ref = x + pe_table[None, :S, :]
    assert out.shape == (B, S, D)
    assert jnp.allclose(out, ref, atol=1e-6, rtol=1e-6), "mismatch vs reference (flat path)"

    # 3-D tiled path (D multiple of 128), full pe table passed without per-call slice.
    B2, S2, D2 = 2, 16, 128
    x2 = jax.random.normal(jax.random.PRNGKey(1), (B2, S2, D2), dtype=jnp.float32)
    pe_table2 = _build_pe_table(D2, max_len=MAX_LEN, dtype=x2.dtype)
    out2 = jax.block_until_ready(positional_encoding_forward(x2, pe_table2))
    ref2 = x2 + pe_table2[None, :S2, :]
    assert jnp.allclose(out2, ref2, atol=1e-6, rtol=1e-6), "mismatch vs reference (tiled path)"

    # 3-D path with a sequence length that is not a multiple of 8 (fallback slice branch).
    B3, S3, D3 = 1, 20, 128
    x3 = jax.random.normal(jax.random.PRNGKey(2), (B3, S3, D3), dtype=jnp.float32)
    out3 = jax.block_until_ready(positional_encoding_forward(x3, pe_table2))
    ref3 = x3 + pe_table2[None, :S3, :]
    assert jnp.allclose(out3, ref3, atol=1e-6, rtol=1e-6), "mismatch vs reference (odd-S path)"

    # bf16 activations: exercises dtype-aware sublane rounding (granularity 16).
    x4 = jax.random.normal(jax.random.PRNGKey(3), (B2, S2, D2), dtype=jnp.float32).astype(jnp.bfloat16)
    pe_table4 = _build_pe_table(D2, max_len=MAX_LEN, dtype=jnp.bfloat16)
    out4 = jax.block_until_ready(positional_encoding_forward(x4, pe_table4))
    ref4 = (x4.astype(jnp.float32) + pe_table4[None, :S2, :].astype(jnp.float32)).astype(jnp.bfloat16)
    assert jnp.allclose(out4.astype(jnp.float32), ref4.astype(jnp.float32),
                        atol=2e-2, rtol=2e-2), "mismatch vs reference (bf16 path)"

    print("KERNEL_OK")
</pallas_src>

<mosaic_0001>
module attributes {stable_mosaic.version = 11 : i64} {
  func.func @_add_kernel(%arg0: i32, %arg1: i32, %arg2: memref<2x256xf32, #tpu.memory_space<vmem>>, %arg3: memref<1x256xf32, #tpu.memory_space<vmem>>, %arg4: memref<2x256xf32, #tpu.memory_space<vmem>>) attributes {dimension_semantics = [#tpu.dimension_semantics<parallel>, #tpu.dimension_semantics<parallel>], iteration_bounds = array<i64: 1, 1>, scalar_prefetch = 0 : i64, scratch_operands = 0 : i64, tpu.core_type = #tpu.core_type<tc>, window_params = [{transform_indices = @transform_0, window_bounds = array<i64: 2, 256>}, {transform_indices = @transform_1, window_bounds = array<i64: 1, 256>}, {transform_indices = @transform_2, window_bounds = array<i64: 2, 256>}]} {
    %c0 = arith.constant 0 : index
    %c0_0 = arith.constant 0 : index
    %0 = vector.load %arg2[%c0, %c0_0] : memref<2x256xf32, #tpu.memory_space<vmem>>, vector<2x256xf32>
    %c0_1 = arith.constant 0 : index
    %c0_2 = arith.constant 0 : index
    %1 = vector.load %arg3[%c0_1, %c0_2] : memref<1x256xf32, #tpu.memory_space<vmem>>, vector<1x256xf32>
    %2 = vector.broadcast %1 : vector<1x256xf32> to vector<2x256xf32>
    %3 = arith.addf %0, %2 : vector<2x256xf32>
    %c0_3 = arith.constant 0 : index
    %c0_4 = arith.constant 0 : index
    %4 = vector.load %arg4[%c0_3, %c0_4] : memref<2x256xf32, #tpu.memory_space<vmem>>, vector<2x256xf32>
    tpu.vector_store %arg4[%c0_3, %c0_4], %3 {strides = array<i32>} : memref<2x256xf32, #tpu.memory_space<vmem>>, vector<2x256xf32>,
    return
  }
  func.func @transform_0(%arg0: i32, %arg1: i32) -> (i32, i32) {
    %c0_i32 = arith.constant 0 : i32
    return %arg1, %arg0 : i32, i32
  }
  func.func @transform_1(%arg0: i32, %arg1: i32) -> (i32, i32) {
    %c0_i32 = arith.constant 0 : i32
    %c0_i32_0 = arith.constant 0 : i32
    return %c0_i32, %arg0 : i32, i32
  }
  func.func @transform_2(%arg0: i32, %arg1: i32) -> (i32, i32) {
    %c0_i32 = arith.constant 0 : i32
    return %arg1, %arg0 : i32, i32
  }
}

</mosaic_0001>

<llo_original>
// kernel: tpu_custom_call.1
$region0: #{tpu_custom_call.1}
  #allocation0 [shape = 'u32[]', space=smem, size = 0x4, offset = 0x4, fixed_abs, tag = 'smem constant byte address 0x4 - core index']
  #allocation1 [shape = 'u32[144,128]{1,0:T(1,128)}', space=vmem, size = 0x12000, scoped, tag = 'internal scratch']
  %s0 = inlined_call_operand.hbm [shape: f32[2,256], index: 0, kind: input, shape index: {}]
  %s1 = inlined_call_operand.hbm [shape: f32[1,256], index: 1, kind: input, shape index: {}]
  %s2 = inlined_call_operand.hbm [shape: f32[2,256], index: 2, kind: output, shape index: {}]
  %s3 = sld [smem:[#allocation0]]
  $region26: #{tpu_custom_call.1} parent=0
    _
  %s5 = ssub.s32 1, %s3
  %s6 = scalar_select 0, %s5, %s3
  $region1: #{tpu_custom_call.1} parent=0
    #allocation2 [shape = 'u8[2048]{0}', space=vmem, size = 0x800, scoped, tag = 'input window, operand 0, single buffered']
    #allocation3 [shape = 's32[1]{0}', space=sflag, size = 0x4, scoped, tag = 'scoped memory for tpu_custom_call.1']
    #allocation4 [shape = 's32[1]{0}', space=sflag, size = 0x4, scoped, tag = 'scoped memory for tpu_custom_call.1']
    #allocation5 [shape = 'u8[1024]{0}', space=vmem, size = 0x400, scoped, tag = 'input window, operand 1, single buffered']
    #allocation6 [shape = 's32[1]{0}', space=sflag, size = 0x4, scoped, tag = 'scoped memory for tpu_custom_call.1']
    #allocation7 [shape = 'u8[2048]{0}', space=vmem, size = 0x800, scoped, tag = 'output window, operand 0, single buffered']
    %7 = vsyncpa [#allocation3], 0
    %8 = vsyncpa [#allocation6], 0
    %9 = vsyncpa [#allocation4], 0
    // Predicated region
    $region2: #{tpu_custom_call.1} parent=1 // pred_check
      _
    $region3: #{tpu_custom_call.1} parent=1 // pred_check_branch
      %11 = sbr.rel (0) target = $region5
    $region4: #{tpu_custom_call.1} parent=1 // pred_region
      %s13 = ssub.s32 64, 64
      %14 = vsyncadd [#allocation3], %s13
      %s16 = sshll.u32 [#allocation2], 4
      %s17 = int_to_ptr.vmem [resolvable:$true] %s16
      %19 = dma.hbm_to_vmem [thread:$0]  %s0, 64, %s17, [#allocation3]
    $region5: #{tpu_custom_call.1} parent=1 // pred_fallthru
      _
    // Predicated region
    $region6: #{tpu_custom_call.1} parent=1 // pred_check
      _
    $region7: #{tpu_custom_call.1} parent=1 // pred_check_branch
      %21 = sbr.rel (0) target = $region9
    $region8: #{tpu_custom_call.1} parent=1 // pred_region
      %s23 = ssub.s32 32, 32
      %24 = vsyncadd [#allocation6], %s23
      %s26 = sshll.u32 [#allocation5], 4
      %s27 = int_to_ptr.vmem [resolvable:$true] %s26
      %29 = dma.hbm_to_vmem [thread:$0]  %s1, 32, %s27, [#allocation6]
    $region9: #{tpu_custom_call.1} parent=1 // pred_fallthru
      _
    // Predicated region
    $region10: #{tpu_custom_call.1} parent=1 // pred_check
      _
    $region11: #{tpu_custom_call.1} parent=1 // pred_check_branch
      %31 = sbr.rel (0) target = $region13
    $region12: #{tpu_custom_call.1} parent=1 // pred_region
      %32 = dma.done [#allocation3], 64
    $region13: #{tpu_custom_call.1} parent=1 // pred_fallthru
      _
    // Predicated region
    $region14: #{tpu_custom_call.1} parent=1 // pred_check
      _
    $region15: #{tpu_custom_call.1} parent=1 // pred_check_branch
      %34 = sbr.rel (0) target = $region17
    $region16: #{tpu_custom_call.1} parent=1 // pred_region
      %35 = dma.done [#allocation6], 32
    $region17: #{tpu_custom_call.1} parent=1 // pred_fallthru
      _
    %v36 = vld [vmem:[#allocation2] sm:$0xf]
    %v37 = vld [vmem:[#allocation5] sm:$0x3]
    %v39 = vlaneseq
    %v40 = vshrl.u32 %v39, 7
    %v41 = vsub.s32 0, %v40
    %v42 = vrot.slane %v37, %v41
    %v43 = vlaneseq
    %v44 = vshrl.u32 %v43, 7
    %v45 = vsub.s32 1, %v44
    %v46 = vrot.slane %v37, %v45
    %v47 = vcombine.low %v42, %v46
    %v49 = vunpack.c.l.s4 1983009808
    %v50 = vunpack.c.0.s8 %v49
    %v51 = vlaneseq
    %v52 = vshrl.u32 %v51, 7
    %v53 = vsub.s32 %v50, %v52
    %v54 = vrot.slane %v47, %v53
    %v56 = vadd.f32 %v36, %v54
    %57 = vst [vmem:[#allocation7] sm:$0xf] %v56
    // Predicated region
    $region18: #{tpu_custom_call.1} parent=1 // pred_check
      _
    $region19: #{tpu_custom_call.1} parent=1 // pred_check_branch
      %59 = sbr.rel (0) target = $region21
    $region20: #{tpu_custom_call.1} parent=1 // pred_region
      %s61 = ssub.s32 64, 64
      %62 = vsyncadd [#allocation4], %s61
      %s64 = sshll.u32 [#allocation7], 4
      %s65 = int_to_ptr.vmem [resolvable:$true] %s64
      %67 = dma.vmem_to_hbm [thread:$0]  %s65, 64, %s2, [#allocation4]
    $region21: #{tpu_custom_call.1} parent=1 // pred_fallthru
      _
    // Predicated region
    $region22: #{tpu_custom_call.1} parent=1 // pred_check
      _
    $region23: #{tpu_custom_call.1} parent=1 // pred_check_branch
      %69 = sbr.rel (0) target = $region25
    $region24: #{tpu_custom_call.1} parent=1 // pred_region
      %70 = dma.done [#allocation4], 64
    $region25: #{tpu_custom_call.1} parent=1 // pred_fallthru
      _
    %71 = vsyncpa [#allocation3], 1
    %72 = vsyncpa [#allocation6], 1
    %73 = vsyncpa [#allocation4], 1

</llo_original>
